<compile_context>
chip_gen: v7x
topology: tpu7x:2x2x1
jax: 0.10.0
libtpu: 0.0.40
codegen_flags: <defaults>
</compile_context>

<pallas_src>
import numpy as np
import jax
import jax.numpy as jnp
from jax.experimental import pallas as pl
from jax.experimental.pallas import tpu as pltpu


def gem_heat_kernel(w_ref, x_ref, o_ref):
    """One row-tile per grid step.

    w_ref : VMEM (D, 1)   precomputed softmax weights (resident across steps)
    x_ref : VMEM (TR, D)  contiguous row tile of the collapsed (B*N, D) input
    o_ref : VMEM (TR, 1)  weighted sum over D (MXU mat-vec, f32 accumulation)
    """
    o_ref[...] = jnp.dot(
        x_ref[...], w_ref[...], preferred_element_type=jnp.float32
    ).astype(o_ref.dtype)


def _round_down_mult(x, m):
    return (x // m) * m


def _round_up_mult(x, m):
    return -(-x // m) * m


def gem_heat(x, p, *, per_buffer_bytes=12 << 20):
    """x: (B, N, D); p: (D,) softmax logits. Returns (B, N) = x @ softmax(p).

    per_buffer_bytes caps the x tile per pipeline buffer (double-buffered), chosen so the
    2-deep pipeline fits v7x's 64 MiB VMEM with headroom (also fine on v5e/v6e).
    """
    B, N, D = x.shape
    assert p.shape == (D,), f"p must have shape ({D},), got {p.shape}"

    R = B * N
    x2d = x.reshape(R, D)                       # free row-major reshape
    itemsize = x2d.dtype.itemsize

    # softmax(p) once, in f32, then cast to x.dtype so the MXU consumes x without a cast.
    w = jax.nn.softmax(p.astype(jnp.float32)).astype(x.dtype).reshape(D, 1)

    # --- budget-aware row-tile selection -------------------------------------------------
    tr = _round_down_mult(per_buffer_bytes // max(D * itemsize, 1), 8)
    tr = max(8, tr)
    tr = min(tr, R)                             # tr == R -> full-axis block (always legal)
    if tr == R and R >= 16:
        # Give the 'parallel' axis >= 2 steps so v7x's two TensorCores can both work.
        half = _round_up_mult(pl.cdiv(R, 2), 8)
        if half < R:
            tr = half
    grid = (pl.cdiv(R, tr),)                    # ragged edge (R % tr != 0) is masked by Pallas

    tile_bytes = tr * D * itemsize
    vmem_limit = min(2 * tile_bytes + (4 << 20), 100 << 20)  # double-buffer + headroom

    out2d = pl.pallas_call(
        gem_heat_kernel,
        out_shape=jax.ShapeDtypeStruct((R, 1), x.dtype),
        grid_spec=pltpu.PrefetchScalarGridSpec(
            num_scalar_prefetch=0,
            grid=grid,
            in_specs=[
                pl.BlockSpec((D, 1), lambda i: (0, 0)),     # softmax weights (resident)
                pl.BlockSpec((tr, D), lambda i: (i, 0)),    # contiguous row tile of x
            ],
            out_specs=pl.BlockSpec((tr, 1), lambda i: (i, 0)),
        ),
        compiler_params=pltpu.CompilerParams(
            dimension_semantics=("parallel",),              # independent tiles -> megacore
            vmem_limit_bytes=vmem_limit,
        ),
        cost_estimate=pl.CostEstimate(
            flops=2 * R * D,
            transcendentals=0,
            bytes_accessed=R * D * itemsize + D * itemsize + R * itemsize,
        ),
    )(w, x2d)

    return out2d.reshape(B, N)


def gem_heat_ref(x, p):
    """Pure-JAX reference mirroring the PyTorch forward."""
    w = jax.nn.softmax(p.astype(jnp.float32))
    return jnp.einsum("bnd,d->bn", x.astype(jnp.float32), w).astype(x.dtype)


if __name__ == "__main__":
    key = jax.random.PRNGKey(0)
    kx, kp = jax.random.split(key)

    # Small shapes consistent with the module: (batch, channels, hidden).
    B, C, D = 2, 4, 32
    x = jax.random.normal(kx, (B, C, D), dtype=jnp.float32)

    # Module init is p = ones(dim) * 3; add a small deterministic perturbation so the
    # softmax weights are non-uniform and the reduction is actually exercised.
    p = 3.0 + 0.1 * jax.random.normal(kp, (D,), dtype=jnp.float32)

    out = gem_heat(x, p)
    out = jax.block_until_ready(out)

    ref = gem_heat_ref(x, p)
    np.testing.assert_allclose(np.asarray(out), np.asarray(ref), rtol=1e-5, atol=1e-5)

    print("KERNEL_OK")
</pallas_src>

<mosaic_0001>
module attributes {stable_mosaic.version = 11 : i64} {
  func.func @gem_heat_kernel(%arg0: i32, %arg1: memref<32x1xf32, #tpu.memory_space<vmem>>, %arg2: memref<8x32xf32, #tpu.memory_space<vmem>>, %arg3: memref<8x1xf32, #tpu.memory_space<vmem>>) attributes {dimension_semantics = [#tpu.dimension_semantics<parallel>], iteration_bounds = array<i64: 1>, scalar_prefetch = 0 : i64, scratch_operands = 0 : i64, tpu.core_type = #tpu.core_type<tc>, window_params = [{pipeline_mode = #tpu.pipeline_mode<synchronous>, transform_indices = @transform_0, window_bounds = array<i64: 32, 1>}, {transform_indices = @transform_1, window_bounds = array<i64: 8, 32>}, {transform_indices = @transform_2, window_bounds = array<i64: 8, 1>}]} {
    %c0 = arith.constant 0 : index
    %c0_0 = arith.constant 0 : index
    %0 = vector.load %arg2[%c0, %c0_0] : memref<8x32xf32, #tpu.memory_space<vmem>>, vector<8x32xf32>
    %c0_1 = arith.constant 0 : index
    %c0_2 = arith.constant 0 : index
    %1 = vector.load %arg1[%c0_1, %c0_2] : memref<32x1xf32, #tpu.memory_space<vmem>>, vector<32x1xf32>
    %cst = arith.constant dense<0.000000e+00> : vector<8x1xf32>
    %2 = tpu.matmul %0, %1, %cst {dimension_numbers = #tpu.dot_dimension_numbers<[1], [0], [0], [1], [0, 0, 1, 1], [], []>} : vector<8x32xf32>, vector<32x1xf32>, vector<8x1xf32> -> vector<8x1xf32>
    %c0_3 = arith.constant 0 : index
    %c0_4 = arith.constant 0 : index
    %3 = vector.load %arg3[%c0_3, %c0_4] : memref<8x1xf32, #tpu.memory_space<vmem>>, vector<8x1xf32>
    tpu.vector_store %arg3[%c0_3, %c0_4], %2 {strides = array<i32>} : memref<8x1xf32, #tpu.memory_space<vmem>>, vector<8x1xf32>,
    return
  }
  func.func @transform_0(%arg0: i32) -> (i32, i32) {
    %c0_i32 = arith.constant 0 : i32
    %c0_i32_0 = arith.constant 0 : i32
    %c0_i32_1 = arith.constant 0 : i32
    return %c0_i32, %c0_i32_0 : i32, i32
  }
  func.func @transform_1(%arg0: i32) -> (i32, i32) {
    %c0_i32 = arith.constant 0 : i32
    %c0_i32_0 = arith.constant 0 : i32
    return %arg0, %c0_i32 : i32, i32
  }
  func.func @transform_2(%arg0: i32) -> (i32, i32) {
    %c0_i32 = arith.constant 0 : i32
    %c0_i32_0 = arith.constant 0 : i32
    return %arg0, %c0_i32 : i32, i32
  }
}

</mosaic_0001>

<llo_original>
// kernel: tpu_custom_call.1
$region0: #{tpu_custom_call.1}
  #allocation0 [shape = 'u32[]', space=smem, size = 0x4, offset = 0x4, fixed_abs, tag = 'smem constant byte address 0x4 - core index']
  #allocation1 [shape = 'u32[144,128]{1,0:T(1,128)}', space=vmem, size = 0x12000, scoped, tag = 'internal scratch']
  %s0 = inlined_call_operand.vmem [shape: f32[32,1], index: 0, kind: input, shape index: {}]
  %s1 = inlined_call_operand.vmem [shape: f32[8,32], index: 1, kind: input, shape index: {}]
  %s2 = inlined_call_operand.vmem [shape: f32[8,1], index: 2, kind: output, shape index: {}]
  %s3 = sld [smem:[#allocation0]]
  $region18: #{tpu_custom_call.1} parent=0
    _
  %s5 = ssub.s32 1, %s3
  %s6 = scalar_select 0, %s5, %s3
  // Predicated region
  $region2: #{tpu_custom_call.1} parent=0 // pred_check
    _
  $region3: #{tpu_custom_call.1} parent=0 // pred_check_branch
    %8 = sbr.rel (0) target = $region5
  $region4: #{tpu_custom_call.1} parent=0 // pred_region
    _
  $region5: #{tpu_custom_call.1} parent=0 // pred_fallthru
    _
  // Predicated region
  $region6: #{tpu_custom_call.1} parent=0 // pred_check
    _
  $region7: #{tpu_custom_call.1} parent=0 // pred_check_branch
    %10 = sbr.rel (0) target = $region9
  $region8: #{tpu_custom_call.1} parent=0 // pred_region
    _
  $region9: #{tpu_custom_call.1} parent=0 // pred_fallthru
    _
  %v11 = vld [vmem:[%s1] sm:$0xff]
  %v12 = vld [vmem:[%s0] sm:$0xff]
  %v13 = vld [vmem:[%s0 + $0x8] sm:$0xff]
  %v14 = vld [vmem:[%s0 + $0x10] sm:$0xff]
  %v15 = vld [vmem:[%s0 + $0x18] sm:$0xff]
  %vm16 = vcmask 261120
  %v18 = vsel %vm16, %v11, 0
  %20 = vmatprep.subr.mxu0 0.0
  %21 = vmatpush1.msra.mxu0 %v12
  %22 = vmatprep.subr.mxu0 0.0
  %23 = vmatpush1.msra.mxu0 %v13
  %24 = vmatprep.subr.mxu0 0.0
  %25 = vmatpush1.msra.mxu0 %v14
  %26 = vmatprep.subr.mxu0 0.0
  %27 = vmatpush1.msra.mxu0 %v15
  %28 = vmatprep.subr.mxu0 0.0
  %29 = vmatpush1.msra.mxu0 0.0
  %30 = vmatprep.subr.mxu0 0.0
  %31 = vmatpush1.msra.mxu0 0.0
  %32 = vmatprep.subr.mxu0 0.0
  %33 = vmatpush1.msra.mxu0 0.0
  %34 = vmatprep.subr.mxu0 0.0
  %35 = vmatpush1.msra.mxu0 0.0
  %36 = vmatprep.subr.mxu0 0.0
  %37 = vmatpush1.msra.mxu0 0.0
  %38 = vmatprep.subr.mxu0 0.0
  %39 = vmatpush1.msra.mxu0 0.0
  %40 = vmatprep.subr.mxu0 0.0
  %41 = vmatpush1.msra.mxu0 0.0
  %42 = vmatprep.subr.mxu0 0.0
  %43 = vmatpush1.msra.mxu0 0.0
  %44 = vmatprep.subr.mxu0 0.0
  %45 = vmatpush1.msra.mxu0 0.0
  %46 = vmatprep.subr.mxu0 0.0
  %47 = vmatpush1.msra.mxu0 0.0
  %48 = vmatprep.subr.mxu0 0.0
  %49 = vmatpush1.msra.mxu0 0.0
  %50 = vmatprep.subr.mxu0 0.0
  %51 = vmatpush1.msra.mxu0 0.0
  %52 = vmatprep.subr.mxu0 0.0
  %53 = vmatpush1.msra.mxu0 0.0
  %54 = vmatprep.subr.mxu0 0.0
  %55 = vmatpush1.msra.mxu0 0.0
  %56 = vmatprep.subr.mxu0 0.0
  %57 = vmatpush1.msra.mxu0 0.0
  %58 = vmatprep.subr.mxu0 0.0
  %59 = vmatpush1.msra.mxu0 0.0
  %60 = vmatprep.subr.mxu0 0.0
  %61 = vmatpush1.msra.mxu0 0.0
  %62 = vmatprep.subr.mxu0 0.0
  %63 = vmatpush1.msra.mxu0 0.0
  %64 = vmatprep.subr.mxu0 0.0
  %65 = vmatpush1.msra.mxu0 0.0
  %66 = vmatprep.subr.mxu0 0.0
  %67 = vmatpush1.msra.mxu0 0.0
  %68 = vmatprep.subr.mxu0 0.0
  %69 = vmatpush1.msra.mxu0 0.0
  %70 = vmatprep.subr.mxu0 0.0
  %71 = vmatpush1.msra.mxu0 0.0
  %72 = vmatprep.subr.mxu0 0.0
  %73 = vmatpush1.msra.mxu0 0.0
  %74 = vmatprep.subr.mxu0 0.0
  %75 = vmatpush1.msra.mxu0 0.0
  %76 = vmatprep.subr.mxu0 0.0
  %77 = vmatpush1.msra.mxu0 0.0
  %78 = vmatprep.subr.mxu0 0.0
  %79 = vmatpush1.msra.mxu0 0.0
  %80 = vmatprep.subr.mxu0 0.0
  %81 = vmatpush1.msra.mxu0 0.0
  %82 = vmatprep.subr.mxu0 0.0
  %83 = vmatpush1.msra.mxu0 0.0
  %84 = vmatprep.mubr.f32.mxu0 0.0
  %85 = vmatmul.mubr.f32.gmra.mrb[0].mxu0 %v18
  %v86 = vpop.f32.mrb[0].mxu0
  %v87 = vadd.f32 0.0, %v86
  %v88 = vpop.f32.mrb[0].mxu0
  %89 = vdwg.mxu0
  %vm90 = vcmask 7168
  %91 = vst.msk [vmem:[%s2] sm:$0xff] %vm90, %v87
  // Predicated region
  $region10: #{tpu_custom_call.1} parent=0 // pred_check
    _
  $region11: #{tpu_custom_call.1} parent=0 // pred_check_branch
    %93 = sbr.rel (0) target = $region13
  $region12: #{tpu_custom_call.1} parent=0 // pred_region
    _
  $region13: #{tpu_custom_call.1} parent=0 // pred_fallthru
    _
  // Predicated region
  $region14: #{tpu_custom_call.1} parent=0 // pred_check
    _
  $region15: #{tpu_custom_call.1} parent=0 // pred_check_branch
    %95 = sbr.rel (0) target = $region17
  $region16: #{tpu_custom_call.1} parent=0 // pred_region
    _
  $region17: #{tpu_custom_call.1} parent=0 // pred_fallthru
    _

</llo_original>
